<compile_context>
chip_gen: v5e
topology: v5e:2x2
jax: 0.10.0
libtpu: 0.0.40
codegen_flags: <defaults>
</compile_context>

<pallas_src>
import jax
import jax.numpy as jnp
from jax.experimental import pallas as pl
from jax.experimental.pallas import tpu as pltpu


_LANES = 128
_SUBLANES = 8


def _round_up(x, m):
    return (x + m - 1) // m * m


def _pick_tiles(n, max_tile):
    """Tile size and padded extent for an axis of length n.

    The tile is either a multiple of 128 (large n) or equal to the full padded
    extent (small n), so it is always a legal (8,128)-aligned BlockSpec dim.
    """
    if n <= max_tile:
        n_pad = _round_up(n, _SUBLANES)
        return n_pad, n_pad
    tile = max_tile                    # max_tile is a multiple of 128
    return tile, _round_up(n, tile)


def _pad2d(a, rows, cols):
    r, c = a.shape
    if r == rows and c == cols:
        return a
    return jnp.pad(a, ((0, rows - r), (0, cols - c)))


# ---------------------------------------------------------------------------
# Kernels
# ---------------------------------------------------------------------------

def _xw_bias_kernel(x_ref, w_ref, b_ref, o_ref):
    """out_tile = x_tile @ w + b   (no-adj path, tiled over rows)."""
    h = jnp.dot(x_ref[...], w_ref[...], preferred_element_type=jnp.float32)
    o_ref[...] = (h + b_ref[...]).astype(o_ref.dtype)


def _adj_matmul_bias_kernel(adj_ref, xw_ref, b_ref, o_ref, acc_ref):
    """out_tile = sum_k adj[i,k] @ xw[k] + b, f32 accumulator in VMEM."""
    k = pl.program_id(1)

    @pl.when(k == 0)
    def _init():
        acc_ref[...] = jnp.zeros_like(acc_ref)

    acc_ref[...] += jnp.dot(adj_ref[...], xw_ref[...],
                            preferred_element_type=jnp.float32)

    @pl.when(k == pl.num_programs(1) - 1)
    def _finalize():
        # Bias added exactly once, only in the finalize step.
        o_ref[...] = (acc_ref[...] + b_ref[...]).astype(o_ref.dtype)


# ---------------------------------------------------------------------------
# Wrapper
# ---------------------------------------------------------------------------

def simple_graph_convolution(x, w, b, adj=None, *, compute_dtype=None,
                             max_tile=512,
                             vmem_limit_bytes=64 * 1024 * 1024):
    """Pallas implementation of SimpleGraphConvolution.forward.

    compute_dtype: dtype used for the matmul operands (e.g. jnp.bfloat16 to
    halve HBM traffic on the memory-bound adj @ h). Accumulation and the bias
    add are always float32. Default: keep the input dtype (fp32 semantics).
    max_tile: row / reduction tile size; 512 fits comfortably in VMEM on
    v5e/v6e (128 MiB) and v7x (64 MiB) for both fp32 and bf16 operands.
    """
    N, c_in = x.shape
    c_out = w.shape[1]
    out_dtype = jnp.float32

    cdt = compute_dtype if compute_dtype is not None else x.dtype

    # Lane-dense output: pad Cout to a multiple of 128.
    c_out_p = _round_up(c_out, _LANES)
    w_p = _pad2d(w, c_in, c_out_p).astype(cdt)
    b_p = _pad2d(b.reshape(1, c_out).astype(jnp.float32), 1, c_out_p)

    if adj is None:
        tm, n_p = _pick_tiles(N, max_tile)
        x_p = _pad2d(x, n_p, c_in).astype(cdt)
        cost = pl.CostEstimate(
            flops=2 * n_p * c_in * c_out_p,
            transcendentals=0,
            bytes_accessed=(x_p.size * x_p.dtype.itemsize
                            + w_p.size * w_p.dtype.itemsize
                            + b_p.size * 4 + n_p * c_out_p * 4))
        out = pl.pallas_call(
            _xw_bias_kernel,
            out_shape=jax.ShapeDtypeStruct((n_p, c_out_p), out_dtype),
            grid=(n_p // tm,),
            in_specs=[
                pl.BlockSpec((tm, c_in), lambda i: (i, 0)),
                pl.BlockSpec((c_in, c_out_p), lambda i: (0, 0)),
                pl.BlockSpec((1, c_out_p), lambda i: (0, 0)),
            ],
            out_specs=pl.BlockSpec((tm, c_out_p), lambda i: (i, 0)),
            compiler_params=pltpu.CompilerParams(
                dimension_semantics=("parallel",),
                vmem_limit_bytes=vmem_limit_bytes),
            cost_estimate=cost,
        )(x_p, w_p, b_p)
        return out[:N, :c_out]

    # ---- adj path: out = adj @ (x @ w) + b ------------------------------
    # Stage xw once (Cin is tiny and badly underfills the MXU; XLA handles
    # this small GEMM, the hand-written kernel only does adj @ xw + b).
    xw = jnp.dot(x.astype(cdt), w_p, preferred_element_type=jnp.float32)
    xw = xw.astype(cdt)                                    # (N, c_out_p)

    tm, n_p = _pick_tiles(N, max_tile)
    tk = tm
    adj_p = _pad2d(adj, n_p, n_p).astype(cdt)
    xw_p = _pad2d(xw, n_p, c_out_p)

    itemsize = jnp.dtype(cdt).itemsize
    cost = pl.CostEstimate(
        flops=2 * n_p * n_p * c_out_p,
        transcendentals=0,
        bytes_accessed=(n_p * n_p * itemsize + n_p * c_out_p * itemsize
                        + c_out_p * 4 + n_p * c_out_p * 4))

    out = pl.pallas_call(
        _adj_matmul_bias_kernel,
        out_shape=jax.ShapeDtypeStruct((n_p, c_out_p), out_dtype),
        grid=(n_p // tm, n_p // tk),                 # reduction axis last
        in_specs=[
            pl.BlockSpec((tm, tk), lambda i, k: (i, k)),        # adj tile
            pl.BlockSpec((tk, c_out_p), lambda i, k: (k, 0)),   # xw tile
            pl.BlockSpec((1, c_out_p), lambda i, k: (0, 0)),    # bias (resident)
        ],
        out_specs=pl.BlockSpec((tm, c_out_p), lambda i, k: (i, 0)),
        scratch_shapes=[pltpu.VMEM((tm, c_out_p), jnp.float32)],
        compiler_params=pltpu.CompilerParams(
            dimension_semantics=("parallel", "arbitrary"),
            vmem_limit_bytes=vmem_limit_bytes),
        cost_estimate=cost,
    )(adj_p, xw_p, b_p)
    return out[:N, :c_out]


def init_params(key, in_channels, out_channels):
    """Xavier-uniform w, zero b (matches reset_parameters)."""
    bound = (6.0 / (in_channels + out_channels)) ** 0.5
    w = jax.random.uniform(
        key, (in_channels, out_channels), dtype=jnp.float32,
        minval=-bound, maxval=bound)
    b = jnp.zeros((out_channels,), dtype=jnp.float32)
    return w, b


if __name__ == "__main__":
    key = jax.random.PRNGKey(0)
    k_w, k_x, k_adj, k_x2, k_adj2 = jax.random.split(key, 5)

    # Small shapes consistent with the module.
    N = 16
    in_channels = 8
    out_channels = 32

    w, b = init_params(k_w, in_channels, out_channels)
    x = jax.random.normal(k_x, (N, in_channels), dtype=jnp.float32)
    adj = jax.random.normal(k_adj, (N, N), dtype=jnp.float32)

    # --- fp32, no adj: x @ w + b ----------------------------------------
    out_no_adj = jax.block_until_ready(simple_graph_convolution(x, w, b))
    ref_no_adj = x @ w + b
    assert out_no_adj.shape == (N, out_channels)
    assert jnp.allclose(out_no_adj, ref_no_adj, atol=1e-3, rtol=1e-3)

    # --- fp32, with adj: adj @ (x @ w) + b -------------------------------
    out_adj = jax.block_until_ready(simple_graph_convolution(x, w, b, adj=adj))
    ref_adj = adj @ (x @ w) + b
    assert out_adj.shape == (N, out_channels)
    assert jnp.allclose(out_adj, ref_adj, atol=1e-3, rtol=1e-3)

    # --- fp32, multi-tile path (exercises the k-reduction accumulator) ---
    N2 = 256
    x2 = jax.random.normal(k_x2, (N2, in_channels), dtype=jnp.float32)
    adj2 = jax.random.normal(k_adj2, (N2, N2), dtype=jnp.float32)
    out2 = jax.block_until_ready(
        simple_graph_convolution(x2, w, b, adj=adj2, max_tile=128))
    ref2 = adj2 @ (x2 @ w) + b
    assert out2.shape == (N2, out_channels)
    assert jnp.allclose(out2, ref2, atol=1e-2, rtol=1e-2)

    # --- bf16 compute (memory-bandwidth optimization), f32 accumulation --
    out_bf16 = jax.block_until_ready(
        simple_graph_convolution(x, w, b, adj=adj,
                                 compute_dtype=jnp.bfloat16))
    xb = x.astype(jnp.bfloat16).astype(jnp.float32)
    wb = w.astype(jnp.bfloat16).astype(jnp.float32)
    ab = adj.astype(jnp.bfloat16).astype(jnp.float32)
    xw_ref = (xb @ wb).astype(jnp.bfloat16).astype(jnp.float32)
    ref_bf16 = ab @ xw_ref + b
    assert jnp.allclose(out_bf16, ref_bf16, atol=1e-2, rtol=1e-2)

    print("KERNEL_OK")
</pallas_src>

<mosaic_0001>
module attributes {stable_mosaic.version = 11 : i64} {
  func.func @_xw_bias_kernel(%arg0: i32, %arg1: memref<16x8xf32, #tpu.memory_space<vmem>>, %arg2: memref<8x128xf32, #tpu.memory_space<vmem>>, %arg3: memref<1x128xf32, #tpu.memory_space<vmem>>, %arg4: memref<16x128xf32, #tpu.memory_space<vmem>>) attributes {dimension_semantics = [#tpu.dimension_semantics<parallel>], iteration_bounds = array<i64: 1>, scalar_prefetch = 0 : i64, scratch_operands = 0 : i64, tpu.core_type = #tpu.core_type<tc>, window_params = [{transform_indices = @transform_0, window_bounds = array<i64: 16, 8>}, {pipeline_mode = #tpu.pipeline_mode<synchronous>, transform_indices = @transform_1, window_bounds = array<i64: 8, 128>}, {pipeline_mode = #tpu.pipeline_mode<synchronous>, transform_indices = @transform_2, window_bounds = array<i64: 1, 128>}, {transform_indices = @transform_3, window_bounds = array<i64: 16, 128>}]} {
    %c0 = arith.constant 0 : index
    %c0_0 = arith.constant 0 : index
    %0 = vector.load %arg1[%c0, %c0_0] : memref<16x8xf32, #tpu.memory_space<vmem>>, vector<16x8xf32>
    %c0_1 = arith.constant 0 : index
    %c0_2 = arith.constant 0 : index
    %1 = vector.load %arg2[%c0_1, %c0_2] : memref<8x128xf32, #tpu.memory_space<vmem>>, vector<8x128xf32>
    %cst = arith.constant dense<0.000000e+00> : vector<16x128xf32>
    %2 = tpu.matmul %0, %1, %cst {dimension_numbers = #tpu.dot_dimension_numbers<[1], [0], [0], [1], [0, 0, 1, 1], [], []>} : vector<16x8xf32>, vector<8x128xf32>, vector<16x128xf32> -> vector<16x128xf32>
    %c0_3 = arith.constant 0 : index
    %c0_4 = arith.constant 0 : index
    %3 = vector.load %arg3[%c0_3, %c0_4] : memref<1x128xf32, #tpu.memory_space<vmem>>, vector<1x128xf32>
    %4 = vector.broadcast %3 : vector<1x128xf32> to vector<16x128xf32>
    %5 = arith.addf %2, %4 : vector<16x128xf32>
    %c0_5 = arith.constant 0 : index
    %c0_6 = arith.constant 0 : index
    %6 = vector.load %arg4[%c0_5, %c0_6] : memref<16x128xf32, #tpu.memory_space<vmem>>, vector<16x128xf32>
    tpu.vector_store %arg4[%c0_5, %c0_6], %5 {strides = array<i32>} : memref<16x128xf32, #tpu.memory_space<vmem>>, vector<16x128xf32>,
    return
  }
  func.func @transform_0(%arg0: i32) -> (i32, i32) {
    %c0_i32 = arith.constant 0 : i32
    %c0_i32_0 = arith.constant 0 : i32
    return %arg0, %c0_i32 : i32, i32
  }
  func.func @transform_1(%arg0: i32) -> (i32, i32) {
    %c0_i32 = arith.constant 0 : i32
    %c0_i32_0 = arith.constant 0 : i32
    %c0_i32_1 = arith.constant 0 : i32
    return %c0_i32, %c0_i32_0 : i32, i32
  }
  func.func @transform_2(%arg0: i32) -> (i32, i32) {
    %c0_i32 = arith.constant 0 : i32
    %c0_i32_0 = arith.constant 0 : i32
    %c0_i32_1 = arith.constant 0 : i32
    return %c0_i32, %c0_i32_0 : i32, i32
  }
  func.func @transform_3(%arg0: i32) -> (i32, i32) {
    %c0_i32 = arith.constant 0 : i32
    %c0_i32_0 = arith.constant 0 : i32
    return %arg0, %c0_i32 : i32, i32
  }
}

</mosaic_0001>

<llo_original>
// kernel: tpu_custom_call.1
$region0: #{tpu_custom_call.1}
  #allocation0 [shape = 'u32[]', space=smem, size = 0x4, offset = 0x4, fixed_abs, tag = 'smem constant byte address 0x4 - core index']
  #allocation1 [shape = 'u32[72,128]{1,0:T(1,128)}', space=vmem, size = 0x9000, scoped, tag = 'internal scratch']
  %s0 = inlined_call_operand.vmem [shape: f32[16,8], index: 0, kind: input, shape index: {}]
  %s1 = inlined_call_operand.vmem [shape: f32[8,128], index: 1, kind: input, shape index: {}]
  %s2 = inlined_call_operand.vmem [shape: f32[1,128], index: 2, kind: input, shape index: {}]
  %s3 = inlined_call_operand.hbm [shape: f32[16,128], index: 3, kind: output, shape index: {}]
  %s4 = sld [smem:[#allocation0]]
  $region22: #{tpu_custom_call.1} parent=0
    _
  %s6 = ssub.s32 1, %s4
  %s7 = scalar_select 0, %s6, %s4
  $region1: #{tpu_custom_call.1} parent=0
    #allocation2 [shape = 'u8[8192]{0}', space=vmem, size = 0x2000, scoped, tag = 'output window, operand 0, single buffered']
    #allocation3 [shape = 's32[1]{0}', space=sflag, size = 0x4, scoped, tag = 'scoped memory for tpu_custom_call.1']
    %8 = vsyncpa [#allocation3], 0
    // Predicated region
    $region2: #{tpu_custom_call.1} parent=1 // pred_check
      _
    $region3: #{tpu_custom_call.1} parent=1 // pred_check_branch
      %10 = sbr.rel (0) target = $region5
    $region4: #{tpu_custom_call.1} parent=1 // pred_region
      _
    $region5: #{tpu_custom_call.1} parent=1 // pred_fallthru
      _
    // Predicated region
    $region6: #{tpu_custom_call.1} parent=1 // pred_check
      _
    $region7: #{tpu_custom_call.1} parent=1 // pred_check_branch
      %12 = sbr.rel (0) target = $region9
    $region8: #{tpu_custom_call.1} parent=1 // pred_region
      _
    $region9: #{tpu_custom_call.1} parent=1 // pred_fallthru
      _
    // Predicated region
    $region10: #{tpu_custom_call.1} parent=1 // pred_check
      _
    $region11: #{tpu_custom_call.1} parent=1 // pred_check_branch
      %14 = sbr.rel (0) target = $region13
    $region12: #{tpu_custom_call.1} parent=1 // pred_region
      _
    $region13: #{tpu_custom_call.1} parent=1 // pred_fallthru
      _
    %v15 = vld [vmem:[%s0] sm:$0xff]
    %v16 = vld [vmem:[%s0 + $0x8] sm:$0xff]
    %v17 = vld [vmem:[%s1] sm:$0xff]
    %v18 = vld [vmem:[%s2] sm:$0x1]
    %v20 = vperm.slane %v18, 0
    %vm22 = vcmask 64512
    %v24 = vsel %vm22, %v15, 0
    %v27 = vsel %vm22, %v16, 0
    %29 = vmatpush.msra.mxu0 0.0
    %30 = vmatpush.msra.mxu0 0.0
    %31 = vmatpush.msra.mxu0 0.0
    %32 = vmatpush.msra.mxu0 0.0
    %33 = vmatpush.msra.mxu0 0.0
    %34 = vmatpush.msra.mxu0 0.0
    %35 = vmatpush.msra.mxu0 0.0
    %36 = vmatpush.msra.mxu0 0.0
    %37 = vmatpush.msra.mxu0 0.0
    %38 = vmatpush.msra.mxu0 0.0
    %39 = vmatpush.msra.mxu0 0.0
    %40 = vmatpush.msra.mxu0 0.0
    %41 = vmatpush.msra.mxu0 0.0
    %42 = vmatpush.msra.mxu0 0.0
    %43 = vmatpush.msra.mxu0 0.0
    %44 = vmatpush.msra.mxu0 %v17
    %45 = vmatmul.f32.gmra.mxu0 %v24
    %v46 = vpop.f32.mrf.mxu0
    %v47 = vadd.f32 %v20, %v46
    %48 = vmatmul.f32.gmra.mxu0 %v27
    %v49 = vpop.f32.mrf.mxu0
    %v50 = vadd.f32 %v20, %v49
    %51 = vdwg.mxu0
    %52 = vst [vmem:[#allocation2] sm:$0xff] %v47
    %53 = vst [vmem:[#allocation2 + $0x8] sm:$0xff] %v50
    // Predicated region
    $region14: #{tpu_custom_call.1} parent=1 // pred_check
      _
    $region15: #{tpu_custom_call.1} parent=1 // pred_check_branch
      %55 = sbr.rel (0) target = $region17
    $region16: #{tpu_custom_call.1} parent=1 // pred_region
      %57 = vsyncadd [#allocation3], 0
      %s58 = sshll.u32 [#allocation2], 4
      %s59 = int_to_ptr.vmem [resolvable:$true] %s58
      %s60 = sshll.u32 %s3, 4
      %s61 = int_to_ptr.hbm [resolvable:$true] %s60
      %66 = dma.vmem_to_hbm [thread:$0]  %s59, 256, %s61, [#allocation3], 128, 128, 8
    $region17: #{tpu_custom_call.1} parent=1 // pred_fallthru
      _
    // Predicated region
    $region18: #{tpu_custom_call.1} parent=1 // pred_check
      _
    $region19: #{tpu_custom_call.1} parent=1 // pred_check_branch
      %68 = sbr.rel (0) target = $region21
    $region20: #{tpu_custom_call.1} parent=1 // pred_region
      %70 = dma.done [#allocation3], 256
    $region21: #{tpu_custom_call.1} parent=1 // pred_fallthru
      _
    %71 = vsyncpa [#allocation3], 1

</llo_original>
